<compile_context>
chip_gen: v6e
topology: v6e:2x2x1
jax: 0.10.0
libtpu: 0.0.40
codegen_flags: <defaults>
</compile_context>

<pallas_src>
import functools

import jax
import jax.numpy as jnp
import numpy as np
from jax.experimental import pallas as pl
from jax.experimental.pallas import tpu as pltpu

# ----- module-consistent configuration -----
FE_ARCH = (32, 64, 32)        # fe_arch: Linear(32,64)+ReLU, Linear(64,32)+ReLU
ACTOR_ARCH = (32, 32)         # actor_arch: Linear(32,32)+ReLU, then Linear(32,T)+ReLU+Softmax
CRITIC_ARCH = (32, 32)        # critic_arch: Linear(32,32)+ReLU, then Linear(32,1)
NUM_TRANSFORMS = 8
R = 4                         # rows per dataset representation (fixed)

LANES = 128                   # lane-dense padding width for all activations / params
D_IN = FE_ARCH[0]             # 32
D_H1 = FE_ARCH[1]             # 64
D_FE = FE_ARCH[2]             # 32
D_HEAD = ACTOR_ARCH[1]        # 32 (== CRITIC_ARCH[1])
T = NUM_TRANSFORMS

DS_TILE = 64                  # datasets per grid step -> 256 bulk rows / tile (v6e/v7x);
                              # on v5e, 32 (128 rows) is already enough to fill the MXU.

# packed-parameter row layout (bf16 slab; all offsets multiples of 16 -> clean bf16 packing)
ROW_FW0 = 0                   # [128,128] fe layer 0 weight (rows :32 , cols :64 valid)
ROW_FW1 = 128                 # [128,128] fe layer 1 weight (rows :64 , cols :32 valid)
ROW_HW0 = 256                 # [128,128] fused head hidden weight [aw0 | cw0]
ROW_HW1 = 384                 # [128,128] block-diag: aw1 -> lanes :T, cw1 -> lane T
ROW_BIAS = 512                # [16 ,128] row 0: fb0, row 1: fb1, row 2: [ab0|cb0], row 3: [ab1|cb1]
TOTAL_ROWS = 528


def ppo_kernel(bulk_ref, p_ref, out_ref):
    f32 = jnp.float32
    bf16 = jnp.bfloat16

    x = bulk_ref[...]                                           # [DS_TILE*R, 128] bf16

    # biases: one 16-row bf16 slot, upcast once to f32 (elementwise math stays f32)
    biases = p_ref[ROW_BIAS:ROW_BIAS + 16, :].astype(f32)       # [16, 128]
    fb0 = biases[0:1, :]
    fb1 = biases[1:2, :]
    hb0 = biases[2:3, :]
    hb1 = biases[3:4, :]

    # ---- feature extractor: (Linear + ReLU) x 2 on the bulk tile ----
    fw0 = p_ref[ROW_FW0:ROW_FW0 + LANES, :]                     # [128, 128] bf16
    h = jnp.maximum(jnp.dot(x, fw0, preferred_element_type=f32) + fb0, 0.0)
    fw1 = p_ref[ROW_FW1:ROW_FW1 + LANES, :]
    h = jnp.maximum(
        jnp.dot(h.astype(bf16), fw1, preferred_element_type=f32) + fb1, 0.0)   # [tile*R,128]

    # ---- aggregator: per-dataset mean over R rows, folded into the MXU ----
    # avg[i, j] = 1/R  iff  row j belongs to dataset i  (block-diagonal averaging matrix)
    r_idx = jax.lax.broadcasted_iota(jnp.int32, (DS_TILE, DS_TILE * R), 0)
    c_idx = jax.lax.broadcasted_iota(jnp.int32, (DS_TILE, DS_TILE * R), 1)
    d = c_idx - r_idx * R
    avg = jnp.where((d >= 0) & (d < R), f32(1.0 / R), f32(0.0)).astype(bf16)
    feats = jnp.dot(avg, h.astype(bf16), preferred_element_type=f32)           # [DS_TILE,128]

    # ---- fused actor/critic hidden layer: [aw0 | cw0] + ReLU ----
    hw0 = p_ref[ROW_HW0:ROW_HW0 + LANES, :]
    hidden = jnp.maximum(
        jnp.dot(feats.astype(bf16), hw0, preferred_element_type=f32) + hb0, 0.0)

    # ---- fused output layer: lanes 0..T-1 actor logits, lane T critic value ----
    hw1 = p_ref[ROW_HW1:ROW_HW1 + LANES, :]
    z = jnp.dot(hidden.astype(bf16), hw1, preferred_element_type=f32) + hb1    # [DS_TILE,128]

    # actor: ReLU(logits) then Softmax over lanes 0..T-1 (module applies ReLU before softmax)
    col = jax.lax.broadcasted_iota(jnp.int32, z.shape, 1)
    actor_mask = col < T
    logits = jnp.maximum(z, 0.0)
    masked = jnp.where(actor_mask, logits, f32(-1e30))
    m = jnp.max(masked, axis=-1, keepdims=True)
    e = jnp.where(actor_mask, jnp.exp(masked - m), 0.0)
    probs = e / jnp.sum(e, axis=-1, keepdims=True)               # exact divide (keeps sum==1)

    # single lane-dense store: probs in lanes 0..T-1, raw critic in lane T, zeros elsewhere
    out_ref[...] = jnp.where(actor_mask, probs, jnp.where(col == T, z, 0.0))


def _init_linear(key, fan_in, fan_out):
    """Deterministic PyTorch-style (uniform +/- 1/sqrt(fan_in)) init; weight is [in, out]."""
    kw, kb = jax.random.split(key)
    bound = 1.0 / float(np.sqrt(fan_in))
    w = jax.random.uniform(kw, (fan_in, fan_out), jnp.float32, -bound, bound)
    b = jax.random.uniform(kb, (1, fan_out), jnp.float32, -bound, bound)
    return w, b


def make_params(seed=0):
    key = jax.random.PRNGKey(seed)
    keys = jax.random.split(key, 6)
    fw0, fb0 = _init_linear(keys[0], FE_ARCH[0], FE_ARCH[1])
    fw1, fb1 = _init_linear(keys[1], FE_ARCH[1], FE_ARCH[2])
    aw0, ab0 = _init_linear(keys[2], ACTOR_ARCH[0], ACTOR_ARCH[1])
    aw1, ab1 = _init_linear(keys[3], ACTOR_ARCH[1], NUM_TRANSFORMS)
    cw0, cb0 = _init_linear(keys[4], CRITIC_ARCH[0], CRITIC_ARCH[1])
    cw1, cb1 = _init_linear(keys[5], CRITIC_ARCH[1], 1)
    return (fw0, fb0, fw1, fb1, aw0, ab0, aw1, ab1, cw0, cb0, cw1, cb1)


def pack_params(params):
    """One-time host-side packing of all 12 tensors into a single bf16 [528, 128] slab."""
    (fw0, fb0, fw1, fb1, aw0, ab0, aw1, ab1, cw0, cb0, cw1, cb1) = params
    p = np.zeros((TOTAL_ROWS, LANES), np.float32)
    p[ROW_FW0:ROW_FW0 + D_IN, :D_H1] = np.asarray(fw0)
    p[ROW_FW1:ROW_FW1 + D_H1, :D_FE] = np.asarray(fw1)
    # fused head hidden layer: [aw0 | cw0]
    p[ROW_HW0:ROW_HW0 + D_FE, :D_HEAD] = np.asarray(aw0)
    p[ROW_HW0:ROW_HW0 + D_FE, D_HEAD:2 * D_HEAD] = np.asarray(cw0)
    # fused output layer: block-diagonal (actor -> lanes :T, critic -> lane T)
    p[ROW_HW1:ROW_HW1 + D_HEAD, :T] = np.asarray(aw1)
    p[ROW_HW1 + D_HEAD:ROW_HW1 + 2 * D_HEAD, T:T + 1] = np.asarray(cw1)
    # biases
    p[ROW_BIAS + 0, :D_H1] = np.asarray(fb0)[0]
    p[ROW_BIAS + 1, :D_FE] = np.asarray(fb1)[0]
    p[ROW_BIAS + 2, :D_HEAD] = np.asarray(ab0)[0]
    p[ROW_BIAS + 2, D_HEAD:2 * D_HEAD] = np.asarray(cb0)[0]
    p[ROW_BIAS + 3, :T] = np.asarray(ab1)[0]
    p[ROW_BIAS + 3, T] = np.asarray(cb1)[0, 0]
    return jnp.asarray(p, dtype=jnp.bfloat16)


@jax.jit
def ppo_forward_batch(bulk, packed_params):
    """bulk: [n_datasets * R, D_IN] float32 (dataset-major row grouping, as in the module).

    Returns (actor [n_datasets, T] softmax probs, critic [n_datasets]).
    """
    n_rows, d_in = bulk.shape
    assert n_rows % R == 0, "each dataset must contribute exactly R rows"
    n_ds = n_rows // R
    n_tiles = max(1, -(-n_ds // DS_TILE))
    n_ds_pad = n_tiles * DS_TILE

    # lane-dense, row-padded, bf16 bulk (zeros in lanes D_IN..127 and in padded datasets)
    xb = jnp.pad(bulk.astype(jnp.bfloat16),
                 ((0, n_ds_pad * R - n_rows), (0, LANES - d_in)))

    out = pl.pallas_call(
        ppo_kernel,
        out_shape=jax.ShapeDtypeStruct((n_ds_pad, LANES), jnp.float32),
        grid=(n_tiles,),
        in_specs=[
            pl.BlockSpec((DS_TILE * R, LANES), lambda i: (i, 0)),     # bulk row tile
            pl.BlockSpec((TOTAL_ROWS, LANES), lambda i: (0, 0)),      # params stay resident
        ],
        out_specs=pl.BlockSpec((DS_TILE, LANES), lambda i: (i, 0)),
        compiler_params=pltpu.CompilerParams(
            dimension_semantics=("parallel",)),                        # megacore on v7x
    )(xb, packed_params)

    return out[:n_ds, :T], out[:n_ds, T]   # actor probs, critic (.squeeze(-1) as in the module)


# ---------------- references ----------------
def _reference_bf16(bulk, params):
    """Mimics the kernel's dtype flow (bf16 dot operands, f32 accum / elementwise)."""
    bf = lambda a: jnp.asarray(a, jnp.bfloat16)
    bdot = lambda a, b: jnp.dot(bf(a), bf(b), preferred_element_type=jnp.float32)
    bb = lambda v: bf(v).astype(jnp.float32)
    (fw0, fb0, fw1, fb1, aw0, ab0, aw1, ab1, cw0, cb0, cw1, cb1) = params
    h = jnp.maximum(bdot(bulk, fw0) + bb(fb0), 0.0)
    h = jnp.maximum(bdot(h, fw1) + bb(fb1), 0.0)
    n_ds = bulk.shape[0] // R
    feats = bf(h).astype(jnp.float32).reshape(n_ds, R, -1).mean(axis=1)
    ah = jnp.maximum(bdot(feats, aw0) + bb(ab0), 0.0)
    logits = jnp.maximum(bdot(ah, aw1) + bb(ab1), 0.0)
    act = jax.nn.softmax(logits, axis=-1)
    ch = jnp.maximum(bdot(feats, cw0) + bb(cb0), 0.0)
    crit = (bdot(ch, cw1) + bb(cb1))[:, 0]
    return act, crit


def _reference_f32(bulk, params):
    """Pure-f32 reference matching the original PyTorch module semantics."""
    (fw0, fb0, fw1, fb1, aw0, ab0, aw1, ab1, cw0, cb0, cw1, cb1) = params
    h = jnp.maximum(bulk @ fw0 + fb0, 0.0)
    h = jnp.maximum(h @ fw1 + fb1, 0.0)
    n_ds = bulk.shape[0] // R
    feats = h.reshape(n_ds, R, -1).mean(axis=1)
    a = jnp.maximum(feats @ aw0 + ab0, 0.0)
    logits = jnp.maximum(a @ aw1 + ab1, 0.0)
    act = jax.nn.softmax(logits, axis=-1)
    c = jnp.maximum(feats @ cw0 + cb0, 0.0)
    crit = (c @ cw1 + cb1)[:, 0]
    return act, crit


if __name__ == "__main__":
    params = make_params(seed=0)
    packed = pack_params(params)          # one-time packing, outside the jitted forward
    key = jax.random.PRNGKey(0)

    # small (module-like, 2 datasets) and batched (128 datasets -> 2 grid steps) cases
    for n_ds in (2, 128):
        bulk = jax.random.normal(jax.random.fold_in(key, n_ds),
                                 (n_ds * R, D_IN), dtype=jnp.float32)

        actor, critic = ppo_forward_batch(bulk, packed)
        jax.block_until_ready((actor, critic))

        assert actor.shape == (n_ds, NUM_TRANSFORMS) and critic.shape == (n_ds,)

        ref_a, ref_c = _reference_bf16(bulk, params)
        assert np.allclose(np.asarray(actor), np.asarray(ref_a), atol=1e-3), "actor mismatch"
        assert np.allclose(np.asarray(critic), np.asarray(ref_c), atol=1e-3), "critic mismatch"
        assert np.allclose(np.asarray(actor).sum(axis=-1), 1.0, atol=1e-4)

        # loose sanity check against the exact-f32 module semantics (bf16 rounding only)
        f32_a, f32_c = _reference_f32(bulk, params)
        assert np.allclose(np.asarray(actor), np.asarray(f32_a), atol=0.1)
        assert np.allclose(np.asarray(critic), np.asarray(f32_c), atol=0.1)

    print("KERNEL_OK")
</pallas_src>

<mosaic_0001>
module attributes {stable_mosaic.version = 11 : i64} {
  func.func @ppo_kernel(%arg0: i32, %arg1: memref<256x128xbf16, #tpu.memory_space<vmem>>, %arg2: memref<528x128xbf16, #tpu.memory_space<vmem>>, %arg3: memref<64x128xf32, #tpu.memory_space<vmem>>) attributes {dimension_semantics = [#tpu.dimension_semantics<parallel>], iteration_bounds = array<i64: 1>, scalar_prefetch = 0 : i64, scratch_operands = 0 : i64, tpu.core_type = #tpu.core_type<tc>, window_params = [{transform_indices = @transform_0, window_bounds = array<i64: 256, 128>}, {pipeline_mode = #tpu.pipeline_mode<synchronous>, transform_indices = @transform_1, window_bounds = array<i64: 528, 128>}, {transform_indices = @transform_2, window_bounds = array<i64: 64, 128>}]} {
    %c0 = arith.constant 0 : index
    %c0_0 = arith.constant 0 : index
    %0 = vector.load %arg1[%c0, %c0_0] : memref<256x128xbf16, #tpu.memory_space<vmem>>, vector<256x128xbf16>
    %c512 = arith.constant 512 : index
    %c0_1 = arith.constant 0 : index
    %1 = vector.load %arg2[%c512, %c0_1] : memref<528x128xbf16, #tpu.memory_space<vmem>>, vector<16x128xbf16>
    %2 = arith.extf %1 : vector<16x128xbf16> to vector<16x128xf32>
    %3 = vector.extract_strided_slice %2 {offsets = [0, 0], sizes = [1, 128], strides = [1, 1]} : vector<16x128xf32> to vector<1x128xf32>
    %4 = vector.extract_strided_slice %2 {offsets = [1, 0], sizes = [1, 128], strides = [1, 1]} : vector<16x128xf32> to vector<1x128xf32>
    %5 = vector.extract_strided_slice %2 {offsets = [2, 0], sizes = [1, 128], strides = [1, 1]} : vector<16x128xf32> to vector<1x128xf32>
    %6 = vector.extract_strided_slice %2 {offsets = [3, 0], sizes = [1, 128], strides = [1, 1]} : vector<16x128xf32> to vector<1x128xf32>
    %c0_2 = arith.constant 0 : index
    %c0_3 = arith.constant 0 : index
    %7 = vector.load %arg2[%c0_2, %c0_3] : memref<528x128xbf16, #tpu.memory_space<vmem>>, vector<128x128xbf16>
    %cst = arith.constant dense<0.000000e+00> : vector<256x128xf32>
    %8 = tpu.matmul %0, %7, %cst {dimension_numbers = #tpu.dot_dimension_numbers<[1], [0], [0], [1], [0, 0, 1, 1], [], []>} : vector<256x128xbf16>, vector<128x128xbf16>, vector<256x128xf32> -> vector<256x128xf32>
    %9 = vector.broadcast %3 : vector<1x128xf32> to vector<256x128xf32>
    %10 = arith.addf %8, %9 : vector<256x128xf32>
    %cst_4 = arith.constant 0.000000e+00 : f32
    %11 = vector.broadcast %cst_4 : f32 to vector<256x128xf32>
    %12 = arith.maximumf %10, %11 : vector<256x128xf32>
    %c128 = arith.constant 128 : index
    %c0_5 = arith.constant 0 : index
    %13 = vector.load %arg2[%c128, %c0_5] : memref<528x128xbf16, #tpu.memory_space<vmem>>, vector<128x128xbf16>
    %14 = arith.truncf %12 : vector<256x128xf32> to vector<256x128xbf16>
    %cst_6 = arith.constant dense<0.000000e+00> : vector<256x128xf32>
    %15 = tpu.matmul %14, %13, %cst_6 {dimension_numbers = #tpu.dot_dimension_numbers<[1], [0], [0], [1], [0, 0, 1, 1], [], []>} : vector<256x128xbf16>, vector<128x128xbf16>, vector<256x128xf32> -> vector<256x128xf32>
    %16 = vector.broadcast %4 : vector<1x128xf32> to vector<256x128xf32>
    %17 = arith.addf %15, %16 : vector<256x128xf32>
    %cst_7 = arith.constant 0.000000e+00 : f32
    %18 = vector.broadcast %cst_7 : f32 to vector<256x128xf32>
    %19 = arith.maximumf %17, %18 : vector<256x128xf32>
    %20 = tpu.iota {dimensions = array<i32: 0>} : vector<64x256xi32>
    %21 = tpu.iota {dimensions = array<i32: 1>} : vector<64x256xi32>
    %c4_i32 = arith.constant 4 : i32
    %22 = vector.broadcast %c4_i32 : i32 to vector<64x256xi32>
    %23 = arith.muli %20, %22 : vector<64x256xi32>
    %24 = arith.subi %21, %23 : vector<64x256xi32>
    %c0_i32 = arith.constant 0 : i32
    %25 = vector.broadcast %c0_i32 : i32 to vector<64x256xi32>
    %26 = arith.cmpi sge, %24, %25 : vector<64x256xi32>
    %c4_i32_8 = arith.constant 4 : i32
    %27 = vector.broadcast %c4_i32_8 : i32 to vector<64x256xi32>
    %28 = arith.cmpi slt, %24, %27 : vector<64x256xi32>
    %29 = arith.andi %26, %28 : vector<64x256xi1>
    %cst_9 = arith.constant 2.500000e-01 : f32
    %cst_10 = arith.constant 0.000000e+00 : f32
    %30 = vector.broadcast %cst_9 : f32 to vector<64x256xf32>
    %31 = vector.broadcast %cst_10 : f32 to vector<64x256xf32>
    %32 = arith.select %29, %30, %31 : vector<64x256xi1>, vector<64x256xf32>
    %33 = arith.truncf %32 : vector<64x256xf32> to vector<64x256xbf16>
    %34 = arith.truncf %19 : vector<256x128xf32> to vector<256x128xbf16>
    %cst_11 = arith.constant dense<0.000000e+00> : vector<64x128xf32>
    %35 = tpu.matmul %33, %34, %cst_11 {dimension_numbers = #tpu.dot_dimension_numbers<[1], [0], [0], [1], [0, 0, 1, 1], [], []>} : vector<64x256xbf16>, vector<256x128xbf16>, vector<64x128xf32> -> vector<64x128xf32>
    %c256 = arith.constant 256 : index
    %c0_12 = arith.constant 0 : index
    %36 = vector.load %arg2[%c256, %c0_12] : memref<528x128xbf16, #tpu.memory_space<vmem>>, vector<128x128xbf16>
    %37 = arith.truncf %35 : vector<64x128xf32> to vector<64x128xbf16>
    %cst_13 = arith.constant dense<0.000000e+00> : vector<64x128xf32>
    %38 = tpu.matmul %37, %36, %cst_13 {dimension_numbers = #tpu.dot_dimension_numbers<[1], [0], [0], [1], [0, 0, 1, 1], [], []>} : vector<64x128xbf16>, vector<128x128xbf16>, vector<64x128xf32> -> vector<64x128xf32>
    %39 = vector.broadcast %5 : vector<1x128xf32> to vector<64x128xf32>
    %40 = arith.addf %38, %39 : vector<64x128xf32>
    %cst_14 = arith.constant 0.000000e+00 : f32
    %41 = vector.broadcast %cst_14 : f32 to vector<64x128xf32>
    %42 = arith.maximumf %40, %41 : vector<64x128xf32>
    %c384 = arith.constant 384 : index
    %c0_15 = arith.constant 0 : index
    %43 = vector.load %arg2[%c384, %c0_15] : memref<528x128xbf16, #tpu.memory_space<vmem>>, vector<128x128xbf16>
    %44 = arith.truncf %42 : vector<64x128xf32> to vector<64x128xbf16>
    %cst_16 = arith.constant dense<0.000000e+00> : vector<64x128xf32>
    %45 = tpu.matmul %44, %43, %cst_16 {dimension_numbers = #tpu.dot_dimension_numbers<[1], [0], [0], [1], [0, 0, 1, 1], [], []>} : vector<64x128xbf16>, vector<128x128xbf16>, vector<64x128xf32> -> vector<64x128xf32>
    %46 = vector.broadcast %6 : vector<1x128xf32> to vector<64x128xf32>
    %47 = arith.addf %45, %46 : vector<64x128xf32>
    %48 = tpu.iota {dimensions = array<i32: 1>} : vector<64x128xi32>
    %c8_i32 = arith.constant 8 : i32
    %49 = vector.broadcast %c8_i32 : i32 to vector<64x128xi32>
    %50 = arith.cmpi slt, %48, %49 : vector<64x128xi32>
    %cst_17 = arith.constant 0.000000e+00 : f32
    %51 = vector.broadcast %cst_17 : f32 to vector<64x128xf32>
    %52 = arith.maximumf %47, %51 : vector<64x128xf32>
    %cst_18 = arith.constant -1.000000e+30 : f32
    %53 = vector.broadcast %cst_18 : f32 to vector<64x128xf32>
    %54 = arith.select %50, %52, %53 : vector<64x128xi1>, vector<64x128xf32>
    %cst_19 = arith.constant dense<0xFF800000> : vector<64xf32>
    %55 = vector.multi_reduction <maximumf>, %54, %cst_19 [1] : vector<64x128xf32> to vector<64xf32>
    %56 = vector.shape_cast %55 : vector<64xf32> to vector<64x1xf32>
    %57 = vector.broadcast %56 : vector<64x1xf32> to vector<64x128xf32>
    %58 = arith.subf %54, %57 : vector<64x128xf32>
    %59 = math.exp %58 : vector<64x128xf32>
    %cst_20 = arith.constant 0.000000e+00 : f32
    %60 = vector.broadcast %cst_20 : f32 to vector<64x128xf32>
    %61 = arith.select %50, %59, %60 : vector<64x128xi1>, vector<64x128xf32>
    %cst_21 = arith.constant dense<0.000000e+00> : vector<64xf32>
    %62 = vector.multi_reduction <add>, %61, %cst_21 [1] : vector<64x128xf32> to vector<64xf32>
    %63 = vector.shape_cast %62 : vector<64xf32> to vector<64x1xf32>
    %64 = vector.broadcast %63 : vector<64x1xf32> to vector<64x128xf32>
    %65 = arith.divf %61, %64 : vector<64x128xf32>
    %c8_i32_22 = arith.constant 8 : i32
    %66 = vector.broadcast %c8_i32_22 : i32 to vector<64x128xi32>
    %67 = arith.cmpi eq, %48, %66 : vector<64x128xi32>
    %cst_23 = arith.constant 0.000000e+00 : f32
    %68 = vector.broadcast %cst_23 : f32 to vector<64x128xf32>
    %69 = arith.select %67, %47, %68 : vector<64x128xi1>, vector<64x128xf32>
    %70 = arith.select %50, %65, %69 : vector<64x128xi1>, vector<64x128xf32>
    %c0_24 = arith.constant 0 : index
    %c0_25 = arith.constant 0 : index
    %71 = vector.load %arg3[%c0_24, %c0_25] : memref<64x128xf32, #tpu.memory_space<vmem>>, vector<64x128xf32>
    tpu.vector_store %arg3[%c0_24, %c0_25], %70 {strides = array<i32>} : memref<64x128xf32, #tpu.memory_space<vmem>>, vector<64x128xf32>,
    return
  }
  func.func @transform_0(%arg0: i32) -> (i32, i32) {
    %c0_i32 = arith.constant 0 : i32
    %c0_i32_0 = arith.constant 0 : i32
    return %arg0, %c0_i32 : i32, i32
  }
  func.func @transform_1(%arg0: i32) -> (i32, i32) {
    %c0_i32 = arith.constant 0 : i32
    %c0_i32_0 = arith.constant 0 : i32
    %c0_i32_1 = arith.constant 0 : i32
    return %c0_i32, %c0_i32_0 : i32, i32
  }
  func.func @transform_2(%arg0: i32) -> (i32, i32) {
    %c0_i32 = arith.constant 0 : i32
    %c0_i32_0 = arith.constant 0 : i32
    return %arg0, %c0_i32 : i32, i32
  }
}

</mosaic_0001>

<llo_original>
// kernel: ppo_forward_batch.1
$region0: #{ppo_forward_batch.1}
  #allocation0 [shape = 'u32[]', space=smem, size = 0x4, offset = 0x4, fixed_abs, tag = 'smem constant byte address 0x4 - core index']
  #allocation1 [shape = 'u32[144,128]{1,0:T(1,128)}', space=vmem, size = 0x12000, scoped, tag = 'internal scratch']
  %s0 = inlined_call_operand.vmem [shape: bf16[256,128], index: 0, kind: input, shape index: {}]
  %s1 = inlined_call_operand.hbm [shape: bf16[528,128], index: 1, kind: input, shape index: {}]
  %s2 = inlined_call_operand.vmem [shape: f32[64,128], index: 2, kind: output, shape index: {}]
  %s3 = sld [smem:[#allocation0]]
  $region22: #{ppo_forward_batch.1} parent=0
    _
  %s5 = ssub.s32 1, %s3
  %s6 = scalar_select 0, %s5, %s3
  $region1: #{ppo_forward_batch.1} parent=0
    #allocation2 [shape = 'u8[135168]{0}', space=vmem, size = 0x21000, scoped, tag = 'input window, operand 1, single buffered']
    #allocation3 [shape = 's32[1]{0}', space=sflag, size = 0x4, scoped, tag = 'scoped memory for ppo_forward_batch.1']
    %7 = vsyncpa [#allocation3], 0
    // Predicated region
    $region2: #{ppo_forward_batch.1} parent=1 // pred_check
      _
    $region3: #{ppo_forward_batch.1} parent=1 // pred_check_branch
      %9 = sbr.rel (0) target = $region5
    $region4: #{ppo_forward_batch.1} parent=1 // pred_region
      _
    $region5: #{ppo_forward_batch.1} parent=1 // pred_fallthru
      _
    // Predicated region
    $region6: #{ppo_forward_batch.1} parent=1 // pred_check
      _
    $region7: #{ppo_forward_batch.1} parent=1 // pred_check_branch
      %11 = sbr.rel (0) target = $region9
    $region8: #{ppo_forward_batch.1} parent=1 // pred_region
      %s13 = ssub.s32 4224, 4224
      %14 = vsyncadd [#allocation3], %s13
      %s15 = sshll.u32 [#allocation2], 4
      %s16 = int_to_ptr.vmem [resolvable:$true] %s15
      %21 = dma.hbm_to_vmem [thread:$0]  %s1, 4224, %s16, [#allocation3], 64, 64, 4
    $region9: #{ppo_forward_batch.1} parent=1 // pred_fallthru
      _
    // Predicated region
    $region10: #{ppo_forward_batch.1} parent=1 // pred_check
      _
    $region11: #{ppo_forward_batch.1} parent=1 // pred_check_branch
      %23 = sbr.rel (0) target = $region13
    $region12: #{ppo_forward_batch.1} parent=1 // pred_region
      %24 = dma.done [#allocation3], 4224
    $region13: #{ppo_forward_batch.1} parent=1 // pred_fallthru
      _
    %v26 = vld [vmem:[%s0] sm:$0xf]
    %v27 = vld [vmem:[%s0 + $0x4] sm:$0xf]
    %v28 = vld [vmem:[%s0 + $0x8] sm:$0xf]
    %v29 = vld [vmem:[%s0 + $0xc] sm:$0xf]
    %v30 = vld [vmem:[%s0 + $0x10] sm:$0xf]
    %v31 = vld [vmem:[%s0 + $0x14] sm:$0xf]
    %v32 = vld [vmem:[%s0 + $0x18] sm:$0xf]
    %v33 = vld [vmem:[%s0 + $0x1c] sm:$0xf]
    %v34 = vld [vmem:[%s0 + $0x20] sm:$0xf]
    %v35 = vld [vmem:[%s0 + $0x24] sm:$0xf]
    %v36 = vld [vmem:[%s0 + $0x28] sm:$0xf]
    %v37 = vld [vmem:[%s0 + $0x2c] sm:$0xf]
    %v38 = vld [vmem:[%s0 + $0x30] sm:$0xf]
    %v39 = vld [vmem:[%s0 + $0x34] sm:$0xf]
    %v40 = vld [vmem:[%s0 + $0x38] sm:$0xf]
    %v41 = vld [vmem:[%s0 + $0x3c] sm:$0xf]
    %v42 = vld [vmem:[%s0 + $0x40] sm:$0xf]
    %v43 = vld [vmem:[%s0 + $0x44] sm:$0xf]
    %v44 = vld [vmem:[%s0 + $0x48] sm:$0xf]
    %v45 = vld [vmem:[%s0 + $0x4c] sm:$0xf]
    %v46 = vld [vmem:[%s0 + $0x50] sm:$0xf]
    %v47 = vld [vmem:[%s0 + $0x54] sm:$0xf]
    %v48 = vld [vmem:[%s0 + $0x58] sm:$0xf]
    %v49 = vld [vmem:[%s0 + $0x5c] sm:$0xf]
    %v50 = vld [vmem:[%s0 + $0x60] sm:$0xf]
    %v51 = vld [vmem:[%s0 + $0x64] sm:$0xf]
    %v52 = vld [vmem:[%s0 + $0x68] sm:$0xf]
    %v53 = vld [vmem:[%s0 + $0x6c] sm:$0xf]
    %v54 = vld [vmem:[%s0 + $0x70] sm:$0xf]
    %v55 = vld [vmem:[%s0 + $0x74] sm:$0xf]
    %v56 = vld [vmem:[%s0 + $0x78] sm:$0xf]
    %v57 = vld [vmem:[%s0 + $0x7c] sm:$0xf]
    %v58 = vld [vmem:[#allocation2 + $0x100] sm:$0xf]
    %v59 = vunpack.c.l.bf16 %v58
    %v60 = vld [vmem:[#allocation2] sm:$0xf]
    %v61 = vld [vmem:[#allocation2 + $0x4] sm:$0xf]
    %v62 = vld [vmem:[#allocation2 + $0x8] sm:$0xf]
    %v63 = vld [vmem:[#allocation2 + $0xc] sm:$0xf]
    %v64 = vld [vmem:[#allocation2 + $0x10] sm:$0xf]
    %v65 = vld [vmem:[#allocation2 + $0x14] sm:$0xf]
    %v66 = vld [vmem:[#allocation2 + $0x18] sm:$0xf]
    %v67 = vld [vmem:[#allocation2 + $0x1c] sm:$0xf]
    %v68 = vld [vmem:[#allocation2 + $0x20] sm:$0xf]
    %v69 = vld [vmem:[#allocation2 + $0x24] sm:$0xf]
    %v70 = vld [vmem:[#allocation2 + $0x28] sm:$0xf]
    %v71 = vld [vmem:[#allocation2 + $0x2c] sm:$0xf]
    %v72 = vld [vmem:[#allocation2 + $0x30] sm:$0xf]
    %v73 = vld [vmem:[#allocation2 + $0x34] sm:$0xf]
    %v74 = vld [vmem:[#allocation2 + $0x38] sm:$0xf]
    %v75 = vld [vmem:[#allocation2 + $0x3c] sm:$0xf]
    %v76 = vlaneseq
    %v77 = vshrl.u32 %v76, 7
    %v78 = vsub.s32 0, %v77
    %v79 = vrot.slane %v59, %v78
    %v112 = vunpack.c.l.b16 %v26
    %v113 = vunpack.c.l.b16 %v27
    %v114 = vunpack.c.l.b16 %v28
    %v115 = vunpack.c.l.b16 %v29
    %v116 = vunpack.c.l.b16 %v30
    %v117 = vunpack.c.l.b16 %v31
    %v118 = vunpack.c.l.b16 %v32
    %v119 = vunpack.c.l.b16 %v33
    %v120 = vunpack.c.l.b16 %v34
    %v121 = vunpack.c.l.b16 %v35
    %v122 = vunpack.c.l.b16 %v36
    %v123 = vunpack.c.l.b16 %v37
    %v124 = vunpack.c.l.b16 %v38
    %v125 = vunpack.c.l.b16 %v39
    %v126 = vunpack.c.l.b16 %v40
    %v127 = vunpack.c.l.b16 %v41
    %v128 = vunpack.c.l.b16 %v42
    %v129 = vunpack.c.l.b16 %v43
    %v130 = vunpack.c.l.b16 %v44
    %v131 = vunpack.c.l.b16 %v45
    %v132 = vunpack.c.l.b16 %v46
    %v133 = vunpack.c.l.b16 %v47
    %v134 = vunpack.c.l.b16 %v48
    %v135 = vunpack.c.l.b16 %v49
    %v136 = vunpack.c.l.b16 %v50
    %v137 = vunpack.c.l.b16 %v51
    %v138 = vunpack.c.l.b16 %v52
    %v139 = vunpack.c.l.b16 %v53
    %v140 = vunpack.c.l.b16 %v54
    %v141 = vunpack.c.l.b16 %v55
    %v142 = vunpack.c.l.b16 %v56
    %v143 = vunpack.c.l.b16 %v57
    %v144 = vpack.c.b16 %v113, %v112
    %v145 = vpack.c.b16 %v115, %v114
    %v146 = vpack.c.b16 %v117, %v116
    %v147 = vpack.c.b16 %v119, %v118
    %v148 = vpack.c.b16 %v121, %v120
    %v149 = vpack.c.b16 %v123, %v122
    %v150 = vpack.c.b16 %v125, %v124
    %v151 = vpack.c.b16 %v127, %v126
    %v152 = vpack.c.b16 %v129, %v128
    %v153 = vpack.c.b16 %v131, %v130
    %v154 = vpack.c.b16 %v133, %v132
    %v155 = vpack.c.b16 %v135, %v134
    %v156 = vpack.c.b16 %v137, %v136
    %v157 = vpack.c.b16 %v139, %v138
    %v158 = vpack.c.b16 %v141, %v140
    %v159 = vpack.c.b16 %v143, %v142
    %v192 = vunpack.c.l.b16 %v60
    %v193 = vunpack.c.l.b16 %v61
    %v194 = vunpack.c.l.b16 %v62
    %v195 = vunpack.c.l.b16 %v63
    %v196 = vunpack.c.l.b16 %v64
    %v197 = vunpack.c.l.b16 %v65
    %v198 = vunpack.c.l.b16 %v66
    %v199 = vunpack.c.l.b16 %v67
    %v200 = vunpack.c.l.b16 %v68
    %v201 = vunpack.c.l.b16 %v69
    %v202 = vunpack.c.l.b16 %v70
    %v203 = vunpack.c.l.b16 %v71
    %v204 = vunpack.c.l.b16 %v72
    %v205 = vunpack.c.l.b16 %v73
    %v206 = vunpack.c.l.b16 %v74
    %v207 = vunpack.c.l.b16 %v75
    %v208 = vpack.c.b16 %v193, %v192
    %v209 = vpack.c.b16 %v195, %v194
    %v210 = vpack.c.b16 %v197, %v196
    %v211 = vpack.c.b16 %v199, %v198
    %v212 = vpack.c.b16 %v201, %v200
    %v213 = vpack.c.b16 %v203, %v202
    %v214 = vpack.c.b16 %v205, %v204
    %v215 = vpack.c.b16 %v207, %v206
    %224 = vmatprep.subr.bf16.mxu0 0
    %225 = vmatpush1.bf16.msra.mxu0 %v215
    %226 = vmatprep.subr.bf16.mxu0 0
    %227 = vmatpush1.bf16.msra.mxu0 %v214
    %228 = vmatprep.subr.bf16.mxu0 0
    %229 = vmatpush1.bf16.msra.mxu0 %v213
    %230 = vmatprep.subr.bf16.mxu0 0
    %231 = vmatpush1.bf16.msra.mxu0 %v212
    %232 = vmatprep.subr.bf16.mxu0 0
    %233 = vmatpush1.bf16.msra.mxu0 %v211
    %234 = vmatprep.subr.bf16.mxu0 0
    %235 = vmatpush1.bf16.msra.mxu0 %v210
    %236 = vmatprep.subr.bf16.mxu0 0
    %237 = vmatpush1.bf16.msra.mxu0 %v209
    %238 = vmatprep.subr.bf16.mxu0 0
    %239 = vmatpush1.bf16.msra.mxu0 %v208
    %240 = vmatprep.subr.bf16.mxu0 0
    %241 = vmatpush2.bf16.msra.mxu0 0
    %242 = vmatprep.subr.bf16.mxu0 0
    %243 = vmatpush2.bf16.msra.mxu0 0
    %244 = vmatprep.subr.bf16.mxu0 0
    %245 = vmatpush2.bf16.msra.mxu0 0
    %246 = vmatprep.subr.bf16.mxu0 0
    %247 = vmatpush2.bf16.msra.mxu0 0
    %248 = vmatprep.subr.bf16.mxu0 0
    %249 = vmatpush2.bf16.msra.mxu0 0
    %250 = vmatprep.subr.bf16.mxu0 0
    %251 = vmatpush2.bf16.msra.mxu0 0
    %252 = vmatprep.subr.bf16.mxu0 0
    %253 = vmatpush2.bf16.msra.mxu0 0
    %254 = vmatprep.subr.bf16.mxu0 0
    %255 = vmatpush2.bf16.msra.mxu0 0
    %256 = vmatprep.mubr.bf16.mxu0 0
    %257 = vmatmul.mubr.bf16.gmra.mxu0 %v144
    %v258 = vpop.f32.mrf.mxu0
    %v259 = vadd.f32 %v79, %v258
    %v260 = vpop.f32.mrf.mxu0
    %v261 = vpop.f32.mrf.mxu0
    %v262 = vadd.f32 %v79, %v261
    %v263 = vpop.f32.mrf.mxu0
    %264 = vmatprep.mubr.bf16.mxu0 0
    %265 = vmatmul.mubr.bf16.gmra.mxu0 %v145
    %v266 = vpop.f32.mrf.mxu0
    %v267 = vadd.f32 %v79, %v266
    %v268 = vpop.f32.mrf.mxu0
    %v269 = vpop.f32.mrf.mxu0
    %v270 = vadd.f32 %v79, %v269
    %v271 = vpop.f32.mrf.mxu0
    %272 = vmatprep.mubr.bf16.mxu0 0
    %273 = vmatmul.mubr.bf16.gmra.mxu0 %v146
    %v274 = vpop.f32.mrf.mxu0
    %v275 = vadd.f32 %v79, %v274
    %v276 = vpop.f32.mrf.mxu0
    %v277 = vpop.f32.mrf.mxu0
    %v278 = vadd.f32 %v79, %v277
    %v279 = vpop.f32.mrf.mxu0
    %280 = vmatprep.mubr.bf16.mxu0 0
    %281 = vmatmul.mubr.bf16.gmra.mxu0 %v147
    %v282 = vpop.f32.mrf.mxu0
    %v283 = vadd.f32 %v79, %v282
    %v284 = vpop.f32.mrf.mxu0
    %v285 = vpop.f32.mrf.mxu0
    %v286 = vadd.f32 %v79, %v285
    %v287 = vpop.f32.mrf.mxu0
    %288 = vmatprep.mubr.bf16.mxu0 0
    %289 = vmatmul.mubr.bf16.gmra.mxu0 %v148
    %v290 = vpop.f32.mrf.mxu0
    %v291 = vadd.f32 %v79, %v290
    %v292 = vpop.f32.mrf.mxu0
    %v293 = vpop.f32.mrf.mxu0
    %v294 = vadd.f32 %v79, %v293
    %v295 = vpop.f32.mrf.mxu0
    %296 = vmatprep.mubr.bf16.mxu0 0
    %297 = vmatmul.mubr.bf16.gmra.mxu0 %v149
    %v298 = vpop.f32.mrf.mxu0
    %v299 = vadd.f32 %v79, %v298
    %v300 = vpop.f32.mrf.mxu0
    %v301 = vpop.f32.mrf.mxu0
    %v302 = vadd.f32 %v79, %v301
    %v303 = vpop.f32.mrf.mxu0
    %304 = vmatprep.mubr.bf16.mxu0 0
    %305 = vmatmul.mubr.bf16.gmra.mxu0 %v150
    %v306 = vpop.f32.mrf.mxu0
    %v307 = vadd.f32 %v79, %v306
    %v308 = vpop.f32.mrf.mxu0
    %v309 = vpop.f32.mrf.mxu0
    %v310 = vadd.f32 %v79, %v309
    %v311 = vpop.f32.mrf.mxu0
    %312 = vmatprep.mubr.bf16.mxu0 0
    %313 = vmatmul.mubr.bf16.gmra.mxu0 %v151
    %v314 = vpop.f32.mrf.mxu0
    %v315 = vadd.f32 %v79, %v314
    %v316 = vpop.f32.mrf.mxu0
    %v317 = vpop.f32.mrf.mxu0
    %v318 = vadd.f32 %v79, %v317
    %v319 = vpop.f32.mrf.mxu0
    %320 = vmatprep.mubr.bf16.mxu0 0
    %321 = vmatmul.mubr.bf16.gmra.mxu0 %v152
    %v322 = vpop.f32.mrf.mxu0
    %v323 = vadd.f32 %v79, %v322
    %v324 = vpop.f32.mrf.mxu0
    %v325 = vpop.f32.mrf.mxu0
    %v326 = vadd.f32 %v79, %v325
    %v327 = vpop.f32.mrf.mxu0
    %328 = vmatprep.mubr.bf16.mxu0 0
    %329 = vmatmul.mubr.bf16.gmra.mxu0 %v153
    %v330 = vpop.f32.mrf.mxu0
    %v331 = vadd.f32 %v79, %v330
    %v332 = vpop.f32.mrf.mxu0
    %v333 = vpop.f32.mrf.mxu0
    %v334 = vadd.f32 %v79, %v333
    %v335 = vpop.f32.mrf.mxu0
    %336 = vmatprep.mubr.bf16.mxu0 0
    %337 = vmatmul.mubr.bf16.gmra.mxu0 %v154
    %v338 = vpop.f32.mrf.mxu0
    %v339 = vadd.f32 %v79, %v338
    %v340 = vpop.f32.mrf.mxu0
    %v341 = vpop.f32.mrf.mxu0
    %v342 = vadd.f32 %v79, %v341
    %v343 = vpop.f32.mrf.mxu0
    %344 = vmatprep.mubr.bf16.mxu0 0
    %345 = vmatmul.mubr.bf16.gmra.mxu0 %v155
    %v346 = vpop.f32.mrf.mxu0
    %v347 = vadd.f32 %v79, %v346
    %v348 = vpop.f32.mrf.mxu0
    %v349 = vpop.f32.mrf.mxu0
    %v350 = vadd.f32 %v79, %v349
    %v351 = vpop.f32.mrf.mxu0
    %352 = vmatprep.mubr.bf16.mxu0 0
    %353 = vmatmul.mubr.bf16.gmra.mxu0 %v156
    %v354 = vpop.f32.mrf.mxu0
    %v355 = vadd.f32 %v79, %v354
    %v356 = vpop.f32.mrf.mxu0
    %v357 = vpop.f32.mrf.mxu0
    %v358 = vadd.f32 %v79, %v357
    %v359 = vpop.f32.mrf.mxu0
    %360 = vmatprep.mubr.bf16.mxu0 0
    %361 = vmatmul.mubr.bf16.gmra.mxu0 %v157
    %v362 = vpop.f32.mrf.mxu0
    %v363 = vadd.f32 %v79, %v362
    %v364 = vpop.f32.mrf.mxu0
    %v365 = vpop.f32.mrf.mxu0
    %v366 = vadd.f32 %v79, %v365
    %v367 = vpop.f32.mrf.mxu0
    %368 = vmatprep.mubr.bf16.mxu0 0
    %369 = vmatmul.mubr.bf16.gmra.mxu0 %v158
    %v370 = vpop.f32.mrf.mxu0
    %v371 = vadd.f32 %v79, %v370
    %v372 = vpop.f32.mrf.mxu0
    %v373 = vpop.f32.mrf.mxu0
    %v374 = vadd.f32 %v79, %v373
    %v375 = vpop.f32.mrf.mxu0
    %376 = vmatprep.mubr.bf16.mxu0 0
    %377 = vmatmul.mubr.bf16.gmra.mxu0 %v159
    %v378 = vpop.f32.mrf.mxu0
    %v379 = vadd.f32 %v79, %v378
    %v380 = vpop.f32.mrf.mxu0
    %v381 = vpop.f32.mrf.mxu0
    %v382 = vadd.f32 %v79, %v381
    %v383 = vpop.f32.mrf.mxu0
    %384 = vdwg.mxu0
    %v385 = vmax.f32 %v259, 0.0
    %v386 = vmax.f32 %v262, 0.0
    %v387 = vmax.f32 %v267, 0.0
    %v388 = vmax.f32 %v270, 0.0
    %v389 = vmax.f32 %v275, 0.0
    %v390 = vmax.f32 %v278, 0.0
    %v391 = vmax.f32 %v283, 0.0
    %v392 = vmax.f32 %v286, 0.0
    %v393 = vmax.f32 %v291, 0.0
    %v394 = vmax.f32 %v294, 0.0
    %v395 = vmax.f32 %v299, 0.0
    %v396 = vmax.f32 %v302, 0.0
    %v397 = vmax.f32 %v307, 0.0
    %v398 = vmax.f32 %v310, 0.0
    %v399 = vmax.f32 %v315, 0.0
    %v400 = vmax.f32 %v318, 0.0
    %v401 = vmax.f32 %v323, 0.0
    %v402 = vmax.f32 %v326, 0.0
    %v403 = vmax.f32 %v331, 0.0
    %v404 = vmax.f32 %v334, 0.0
    %v405 = vmax.f32 %v339, 0.0
    %v406 = vmax.f32 %v342, 0.0
    %v407 = vmax.f32 %v347, 0.0
    %v408 = vmax.f32 %v350, 0.0
    %v409 = vmax.f32 %v355, 0.0
    %v410 = vmax.f32 %v358, 0.0
    %v411 = vmax.f32 %v363, 0.0
    %v412 = vmax.f32 %v366, 0.0
    %v413 = vmax.f32 %v371, 0.0
    %v414 = vmax.f32 %v374, 0.0
    %v415 = vmax.f32 %v379, 0.0
    %v416 = vmax.f32 %v382, 0.0
    %v417 = vld [vmem:[#allocation2 + $0x40] sm:$0xf]
    %v418 = vld [vmem:[#allocation2 + $0x44] sm:$0xf]
    %v419 = vld [vmem:[#allocation2 + $0x48] sm:$0xf]
    %v420 = vld [vmem:[#allocation2 + $0x4c] sm:$0xf]
    %v421 = vld [vmem:[#allocation2 + $0x50] sm:$0xf]
    %v422 = vld [vmem:[#allocation2 + $0x54] sm:$0xf]
    %v423 = vld [vmem:[#allocation2 + $0x58] sm:$0xf]
    %v424 = vld [vmem:[#allocation2 + $0x5c] sm:$0xf]
    %v425 = vld [vmem:[#allocation2 + $0x60] sm:$0xf]
    %v426 = vld [vmem:[#allocation2 + $0x64] sm:$0xf]
    %v427 = vld [vmem:[#allocation2 + $0x68] sm:$0xf]
    %v428 = vld [vmem:[#allocation2 + $0x6c] sm:$0xf]
    %v429 = vld [vmem:[#allocation2 + $0x70] sm:$0xf]
    %v430 = vld [vmem:[#allocation2 + $0x74] sm:$0xf]
    %v431 = vld [vmem:[#allocation2 + $0x78] sm:$0xf]
    %v432 = vld [vmem:[#allocation2 + $0x7c] sm:$0xf]
    %v433 = vpack.c.bf16 %v386, %v385
    %v434 = vpack.c.bf16 %v388, %v387
    %v435 = vpack.c.bf16 %v390, %v389
    %v436 = vpack.c.bf16 %v392, %v391
    %v437 = vpack.c.bf16 %v394, %v393
    %v438 = vpack.c.bf16 %v396, %v395
    %v439 = vpack.c.bf16 %v398, %v397
    %v440 = vpack.c.bf16 %v400, %v399
    %v441 = vpack.c.bf16 %v402, %v401
    %v442 = vpack.c.bf16 %v404, %v403
    %v443 = vpack.c.bf16 %v406, %v405
    %v444 = vpack.c.bf16 %v408, %v407
    %v445 = vpack.c.bf16 %v410, %v409
    %v446 = vpack.c.bf16 %v412, %v411
    %v447 = vpack.c.bf16 %v414, %v413
    %v448 = vpack.c.bf16 %v416, %v415
    %v449 = vlaneseq
    %v450 = vshrl.u32 %v449, 7
    %v451 = vsub.s32 1, %v450
    %v452 = vrot.slane %v59, %v451
    %v469 = vunpack.c.l.b16 %v417
    %v470 = vunpack.c.l.b16 %v418
    %v471 = vunpack.c.l.b16 %v419
    %v472 = vunpack.c.l.b16 %v420
    %v473 = vunpack.c.l.b16 %v421
    %v474 = vunpack.c.l.b16 %v422
    %v475 = vunpack.c.l.b16 %v423
    %v476 = vunpack.c.l.b16 %v424
    %v477 = vunpack.c.l.b16 %v425
    %v478 = vunpack.c.l.b16 %v426
    %v479 = vunpack.c.l.b16 %v427
    %v480 = vunpack.c.l.b16 %v428
    %v481 = vunpack.c.l.b16 %v429
    %v482 = vunpack.c.l.b16 %v430
    %v483 = vunpack.c.l.b16 %v431
    %v484 = vunpack.c.l.b16 %v432
    %v485 = vpack.c.b16 %v470, %v469
    %v486 = vpack.c.b16 %v472, %v471
    %v487 = vpack.c.b16 %v474, %v473
    %v488 = vpack.c.b16 %v476, %v475
    %v489 = vpack.c.b16 %v478, %v477
    %v490 = vpack.c.b16 %v480, %v479
    %v491 = vpack.c.b16 %v482, %v481
    %v492 = vpack.c.b16 %v484, %v483
    %501 = vmatprep.subr.bf16.mxu0 0
    %502 = vmatpush1.bf16.msra.mxu0 %v492
    %503 = vmatprep.subr.bf16.mxu0 0
    %504 = vmatpush1.bf16.msra.mxu0 %v491
    %505 = vmatprep.subr.bf16.mxu0 0
    %506 = vmatpush1.bf16.msra.mxu0 %v490
    %507 = vmatprep.subr.bf16.mxu0 0
    %508 = vmatpush1.bf16.msra.mxu0 %v489
    %509 = vmatprep.subr.bf16.mxu0 0
    %510 = vmatpush1.bf16.msra.mxu0 %v488
    %511 = vmatprep.subr.bf16.mxu0 0
    %512 = vmatpush1.bf16.msra.mxu0 %v487
    %513 = vmatprep.subr.bf16.mxu0 0
    %514 = vmatpush1.bf16.msra.mxu0 %v486
    %515 = vmatprep.subr.bf16.mxu0 0
    %516 = vmatpush1.bf16.msra.mxu0 %v485
    %517 = vmatprep.subr.bf16.mxu0 0
    %518 = vmatpush2.bf16.msra.mxu0 0
    %519 = vmatprep.subr.bf16.mxu0 0
    %520 = vmatpush2.bf16.msra.mxu0 0
    %521 = vmatprep.subr.bf16.mxu0 0
    %522 = vmatpush2.bf16.msra.mxu0 0
    %523 = vmatprep.subr.bf16.mxu0 0
    %524 = vmatpush2.bf16.msra.mxu0 0
    %525 = vmatprep.subr.bf16.mxu0 0
    %526 = vmatpush2.bf16.msra.mxu0 0
    %527 = vmatprep.subr.bf16.mxu0 0
    %528 = vmatpush2.bf16.msra.mxu0 0
    %529 = vmatprep.subr.bf16.mxu0 0
    %530 = vmatpush2.bf16.msra.mxu0 0
    %531 = vmatprep.subr.bf16.mxu0 0
    %532 = vmatpush2.bf16.msra.mxu0 0
    %533 = vmatprep.mubr.bf16.mxu0 0
    %534 = vmatmul.mubr.bf16.gmra.mxu0 %v433
    %v535 = vpop.f32.mrf.mxu0
    %v536 = vadd.f32 %v452, %v535
    %v537 = vpop.f32.mrf.mxu0
    %v538 = vpop.f32.mrf.mxu0
    %v539 = vadd.f32 %v452, %v538
    %v540 = vpop.f32.mrf.mxu0
    %541 = vmatprep.mubr.bf16.mxu0 0
    %542 = vmatmul.mubr.bf16.gmra.mxu0 %v434
    %v543 = vpop.f32.mrf.mxu0
    %v544 = vadd.f32 %v452, %v543
    %v545 = vpop.f32.mrf.mxu0
    %v546 = vpop.f32.mrf.mxu0
    %v547 = vadd.f32 %v452, %v546
    %v548 = vpop.f32.mrf.mxu0
    %549 = vmatprep.mubr.bf16.mxu0 0
    %550 = vmatmul.mubr.bf16.gmra.mxu0 %v435
    %v551 = vpop.f32.mrf.mxu0
    %v552 = vadd.f32 %v452, %v551
    %v553 = vpop.f32.mrf.mxu0
    %v554 = vpop.f32.mrf.mxu0
    %v555 = vadd.f32 %v452, %v554
    %v556 = vpop.f32.mrf.mxu0
    %557 = vmatprep.mubr.bf16.mxu0 0
    %558 = vmatmul.mubr.bf16.gmra.mxu0 %v436
    %v559 = vpop.f32.mrf.mxu0
    %v560 = vadd.f32 %v452, %v559
    %v561 = vpop.f32.mrf.mxu0
    %v562 = vpop.f32.mrf.mxu0
    %v563 = vadd.f32 %v452, %v562
    %v564 = vpop.f32.mrf.mxu0
    %565 = vmatprep.mubr.bf16.mxu0 0
    %566 = vmatmul.mubr.bf16.gmra.mxu0 %v437
    %v567 = vpop.f32.mrf.mxu0
    %v568 = vadd.f32 %v452, %v567
    %v569 = vpop.f32.mrf.mxu0
    %v570 = vpop.f32.mrf.mxu0
    %v571 = vadd.f32 %v452, %v570
    %v572 = vpop.f32.mrf.mxu0
    %573 = vmatprep.mubr.bf16.mxu0 0
    %574 = vmatmul.mubr.bf16.gmra.mxu0 %v438
    %v575 = vpop.f32.mrf.mxu0
    %v576 = vadd.f32 %v452, %v575
    %v577 = vpop.f32.mrf.mxu0
    %v578 = vpop.f32.mrf.mxu0
    %v579 = vadd.f32 %v452, %v578
    %v580 = vpop.f32.mrf.mxu0
    %581 = vmatprep.mubr.bf16.mxu0 0
    %582 = vmatmul.mubr.bf16.gmra.mxu0 %v439
    %v583 = vpop.f32.mrf.mxu0
    %v584 = vadd.f32 %v452, %v583
    %v585 = vpop.f32.mrf.mxu0
    %v586 = vpop.f32.mrf.mxu0
    %v587 = vadd.f32 %v452, %v586
    %v588 = vpop.f32.mrf.mxu0
    %589 = vmatprep.mubr.bf16.mxu0 0
    %590 = vmatmul.mubr.bf16.gmra.mxu0 %v440
    %v591 = vpop.f32.mrf.mxu0
    %v592 = vadd.f32 %v452, %v591
    %v593 = vpop.f32.mrf.mxu0
    %v594 = vpop.f32.mrf.mxu0
    %v595 = vadd.f32 %v452, %v594
    %v596 = vpop.f32.mrf.mxu0
    %597 = vmatprep.mubr.bf16.mxu0 0
    %598 = vmatmul.mubr.bf16.gmra.mxu0 %v441
    %v599 = vpop.f32.mrf.mxu0
    %v600 = vadd.f32 %v452, %v599
    %v601 = vpop.f32.mrf.mxu0
    %v602 = vpop.f32.mrf.mxu0
    %v603 = vadd.f32 %v452, %v602
    %v604 = vpop.f32.mrf.mxu0
    %605 = vmatprep.mubr.bf16.mxu0 0
    %606 = vmatmul.mubr.bf16.gmra.mxu0 %v442
    %v607 = vpop.f32.mrf.mxu0
    %v608 = vadd.f32 %v452, %v607
    %v609 = vpop.f32.mrf.mxu0
    %v610 = vpop.f32.mrf.mxu0
    %v611 = vadd.f32 %v452, %v610
    %v612 = vpop.f32.mrf.mxu0
    %613 = vmatprep.mubr.bf16.mxu0 0
    %614 = vmatmul.mubr.bf16.gmra.mxu0 %v443
    %v615 = vpop.f32.mrf.mxu0
    %v616 = vadd.f32 %v452, %v615
    %v617 = vpop.f32.mrf.mxu0
    %v618 = vpop.f32.mrf.mxu0
    %v619 = vadd.f32 %v452, %v618
    %v620 = vpop.f32.mrf.mxu0
    %621 = vmatprep.mubr.bf16.mxu0 0
    %622 = vmatmul.mubr.bf16.gmra.mxu0 %v444
    %v623 = vpop.f32.mrf.mxu0
    %v624 = vadd.f32 %v452, %v623
    %v625 = vpop.f32.mrf.mxu0
    %v626 = vpop.f32.mrf.mxu0
    %v627 = vadd.f32 %v452, %v626
    %v628 = vpop.f32.mrf.mxu0
    %629 = vmatprep.mubr.bf16.mxu0 0
    %630 = vmatmul.mubr.bf16.gmra.mxu0 %v445
    %v631 = vpop.f32.mrf.mxu0
    %v632 = vadd.f32 %v452, %v631
    %v633 = vpop.f32.mrf.mxu0
    %v634 = vpop.f32.mrf.mxu0
    %v635 = vadd.f32 %v452, %v634
    %v636 = vpop.f32.mrf.mxu0
    %637 = vmatprep.mubr.bf16.mxu0 0
    %638 = vmatmul.mubr.bf16.gmra.mxu0 %v446
    %v639 = vpop.f32.mrf.mxu0
    %v640 = vadd.f32 %v452, %v639
    %v641 = vpop.f32.mrf.mxu0
    %v642 = vpop.f32.mrf.mxu0
    %v643 = vadd.f32 %v452, %v642
    %v644 = vpop.f32.mrf.mxu0
    %645 = vmatprep.mubr.bf16.mxu0 0
    %646 = vmatmul.mubr.bf16.gmra.mxu0 %v447
    %v647 = vpop.f32.mrf.mxu0
    %v648 = vadd.f32 %v452, %v647
    %v649 = vpop.f32.mrf.mxu0
    %v650 = vpop.f32.mrf.mxu0
    %v651 = vadd.f32 %v452, %v650
    %v652 = vpop.f32.mrf.mxu0
    %653 = vmatprep.mubr.bf16.mxu0 0
    %654 = vmatmul.mubr.bf16.gmra.mxu0 %v448
    %v655 = vpop.f32.mrf.mxu0
    %v656 = vadd.f32 %v452, %v655
    %v657 = vpop.f32.mrf.mxu0
    %v658 = vpop.f32.mrf.mxu0
    %v659 = vadd.f32 %v452, %v658
    %v660 = vpop.f32.mrf.mxu0
    %661 = vdwg.mxu0
    %v662 = vmax.f32 %v536, 0.0
    %v663 = vmax.f32 %v539, 0.0
    %v664 = vmax.f32 %v544, 0.0
    %v665 = vmax.f32 %v547, 0.0
    %v666 = vmax.f32 %v552, 0.0
    %v667 = vmax.f32 %v555, 0.0
    %v668 = vmax.f32 %v560, 0.0
    %v669 = vmax.f32 %v563, 0.0
    %v670 = vmax.f32 %v568, 0.0
    %v671 = vmax.f32 %v571, 0.0
    %v672 = vmax.f32 %v576, 0.0
    %v673 = vmax.f32 %v579, 0.0
    %v674 = vmax.f32 %v584, 0.0
    %v675 = vmax.f32 %v587, 0.0
    %v676 = vmax.f32 %v592, 0.0
    %v677 = vmax.f32 %v595, 0.0
    %v678 = vmax.f32 %v600, 0.0
    %v679 = vmax.f32 %v603, 0.0
    %v680 = vmax.f32 %v608, 0.0
    %v681 = vmax.f32 %v611, 0.0
    %v682 = vmax.f32 %v616, 0.0
    %v683 = vmax.f32 %v619, 0.0
    %v684 = vmax.f32 %v624, 0.0
    %v685 = vmax.f32 %v627, 0.0
    %v686 = vmax.f32 %v632, 0.0
    %v687 = vmax.f32 %v635, 0.0
    %v688 = vmax.f32 %v640, 0.0
    %v689 = vmax.f32 %v643, 0.0
    %v690 = vmax.f32 %v648, 0.0
    %v691 = vmax.f32 %v651, 0.0
    %v692 = vmax.f32 %v656, 0.0
    %v693 = vmax.f32 %v659, 0.0
    %v694 = vlaneseq
    %v695 = vshrl.u32 %v694, 7
    %v696 = vadd.s32 %v695, 8
    %v697 = vadd.s32 %v695, 16
    %v698 = vadd.s32 %v695, 24
    %v699 = vadd.s32 %v695, 32
    %v700 = vadd.s32 %v695, 40
    %v701 = vadd.s32 %v695, 48
    %v702 = vadd.s32 %v695, 56
    %v703 = vlaneseq
    %v704 = vand.u32 %v703, 127
    %v705 = vadd.s32 %v704, 128
    %v706 = vmul.u32 %v695, 4
    %v707 = vmul.u32 %v696, 4
    %v708 = vmul.u32 %v697, 4
    %v709 = vmul.u32 %v698, 4
    %v710 = vmul.u32 %v699, 4
    %v711 = vmul.u32 %v700, 4
    %v712 = vmul.u32 %v701, 4
    %v713 = vmul.u32 %v702, 4
    %v714 = vsub.s32 %v704, %v706
    %v715 = vsub.s32 %v705, %v706
    %v716 = vsub.s32 %v704, %v707
    %v717 = vsub.s32 %v705, %v707
    %v718 = vsub.s32 %v704, %v708
    %v719 = vsub.s32 %v705, %v708
    %v720 = vsub.s32 %v704, %v709
    %v721 = vsub.s32 %v705, %v709
    %v722 = vsub.s32 %v704, %v710
    %v723 = vsub.s32 %v705, %v710
    %v724 = vsub.s32 %v704, %v711
    %v725 = vsub.s32 %v705, %v711
    %v726 = vsub.s32 %v704, %v712
    %v727 = vsub.s32 %v705, %v712
    %v728 = vsub.s32 %v704, %v713
    %v729 = vsub.s32 %v705, %v713
    %vm730 = vcmp.ge.s32.totalorder %v714, 0
    %vm731 = vcmp.ge.s32.totalorder %v715, 0
    %vm732 = vcmp.ge.s32.totalorder %v716, 0
    %vm733 = vcmp.ge.s32.totalorder %v717, 0
    %vm734 = vcmp.ge.s32.totalorder %v718, 0
    %vm735 = vcmp.ge.s32.totalorder %v719, 0
    %vm736 = vcmp.ge.s32.totalorder %v720, 0
    %vm737 = vcmp.ge.s32.totalorder %v721, 0
    %vm738 = vcmp.ge.s32.totalorder %v722, 0
    %vm739 = vcmp.ge.s32.totalorder %v723, 0
    %vm740 = vcmp.ge.s32.totalorder %v724, 0
    %vm741 = vcmp.ge.s32.totalorder %v725, 0
    %vm742 = vcmp.ge.s32.totalorder %v726, 0
    %vm743 = vcmp.ge.s32.totalorder %v727, 0
    %vm744 = vcmp.ge.s32.totalorder %v728, 0
    %vm745 = vcmp.ge.s32.totalorder %v729, 0
    %vm746 = vcmp.lt.s32.totalorder %v714, 4
    %vm747 = vcmp.lt.s32.totalorder %v715, 4
    %vm748 = vcmp.lt.s32.totalorder %v716, 4
    %vm749 = vcmp.lt.s32.totalorder %v717, 4
    %vm750 = vcmp.lt.s32.totalorder %v718, 4
    %vm751 = vcmp.lt.s32.totalorder %v719, 4
    %vm752 = vcmp.lt.s32.totalorder %v720, 4
    %vm753 = vcmp.lt.s32.totalorder %v721, 4
    %vm754 = vcmp.lt.s32.totalorder %v722, 4
    %vm755 = vcmp.lt.s32.totalorder %v723, 4
    %vm756 = vcmp.lt.s32.totalorder %v724, 4
    %vm757 = vcmp.lt.s32.totalorder %v725, 4
    %vm758 = vcmp.lt.s32.totalorder %v726, 4
    %vm759 = vcmp.lt.s32.totalorder %v727, 4
    %vm760 = vcmp.lt.s32.totalorder %v728, 4
    %vm761 = vcmp.lt.s32.totalorder %v729, 4
    %vm762 = vmand %vm730, %vm746
    %vm763 = vmand %vm731, %vm747
    %vm764 = vmand %vm732, %vm748
    %vm765 = vmand %vm733, %vm749
    %vm766 = vmand %vm734, %vm750
    %vm767 = vmand %vm735, %vm751
    %vm768 = vmand %vm736, %vm752
    %vm769 = vmand %vm737, %vm753
    %vm770 = vmand %vm738, %vm754
    %vm771 = vmand %vm739, %vm755
    %vm772 = vmand %vm740, %vm756
    %vm773 = vmand %vm741, %vm757
    %vm774 = vmand %vm742, %vm758
    %vm775 = vmand %vm743, %vm759
    %vm776 = vmand %vm744, %vm760
    %vm777 = vmand %vm745, %vm761
    %v778 = vsel %vm762, 0.25, 0.0
    %v779 = vsel %vm763, 0.25, 0.0
    %v780 = vsel %vm764, 0.25, 0.0
    %v781 = vsel %vm765, 0.25, 0.0
    %v782 = vsel %vm766, 0.25, 0.0
    %v783 = vsel %vm767, 0.25, 0.0
    %v784 = vsel %vm768, 0.25, 0.0
    %v785 = vsel %vm769, 0.25, 0.0
    %v786 = vsel %vm770, 0.25, 0.0
    %v787 = vsel %vm771, 0.25, 0.0
    %v788 = vsel %vm772, 0.25, 0.0
    %v789 = vsel %vm773, 0.25, 0.0
    %v790 = vsel %vm774, 0.25, 0.0
    %v791 = vsel %vm775, 0.25, 0.0
    %v792 = vsel %vm776, 0.25, 0.0
    %v793 = vsel %vm777, 0.25, 0.0
    %v794 = vpack.c.bf16 %v780, %v778
    %v795 = vpack.c.bf16 %v781, %v779
    %v796 = vpack.c.bf16 %v784, %v782
    %v797 = vpack.c.bf16 %v785, %v783
    %v798 = vpack.c.bf16 %v788, %v786
    %v799 = vpack.c.bf16 %v789, %v787
    %v800 = vpack.c.bf16 %v792, %v790
    %v801 = vpack.c.bf16 %v793, %v791
    %v802 = vpack.c.bf16 %v663, %v662
    %v803 = vpack.c.bf16 %v665, %v664
    %v804 = vpack.c.bf16 %v667, %v666
    %v805 = vpack.c.bf16 %v669, %v668
    %v806 = vpack.c.bf16 %v671, %v670
    %v807 = vpack.c.bf16 %v673, %v672
    %v808 = vpack.c.bf16 %v675, %v674
    %v809 = vpack.c.bf16 %v677, %v676
    %v810 = vpack.c.bf16 %v679, %v678
    %v811 = vpack.c.bf16 %v681, %v680
    %v812 = vpack.c.bf16 %v683, %v682
    %v813 = vpack.c.bf16 %v685, %v684
    %v814 = vpack.c.bf16 %v687, %v686
    %v815 = vpack.c.bf16 %v689, %v688
    %v816 = vpack.c.bf16 %v691, %v690
    %v817 = vpack.c.bf16 %v693, %v692
    %818 = vmatprep.subr.bf16.mxu0 0
    %819 = vmatpush1.bf16.msra.mxu0 %v809
    %820 = vmatprep.subr.bf16.mxu0 0
    %821 = vmatpush1.bf16.msra.mxu0 %v808
    %822 = vmatprep.subr.bf16.mxu0 0
    %823 = vmatpush1.bf16.msra.mxu0 %v807
    %824 = vmatprep.subr.bf16.mxu0 0
    %825 = vmatpush1.bf16.msra.mxu0 %v806
    %826 = vmatprep.subr.bf16.mxu0 0
    %827 = vmatpush1.bf16.msra.mxu0 %v805
    %828 = vmatprep.subr.bf16.mxu0 0
    %829 = vmatpush1.bf16.msra.mxu0 %v804
    %830 = vmatprep.subr.bf16.mxu0 0
    %831 = vmatpush1.bf16.msra.mxu0 %v803
    %832 = vmatprep.subr.bf16.mxu0 0
    %833 = vmatpush1.bf16.msra.mxu0 %v802
    %834 = vmatprep.subr.bf16.mxu0 0
    %835 = vmatpush2.bf16.msra.mxu0 %v817
    %836 = vmatprep.subr.bf16.mxu0 0
    %837 = vmatpush2.bf16.msra.mxu0 %v816
    %838 = vmatprep.subr.bf16.mxu0 0
    %839 = vmatpush2.bf16.msra.mxu0 %v815
    %840 = vmatprep.subr.bf16.mxu0 0
    %841 = vmatpush2.bf16.msra.mxu0 %v814
    %842 = vmatprep.subr.bf16.mxu0 0
    %843 = vmatpush2.bf16.msra.mxu0 %v813
    %844 = vmatprep.subr.bf16.mxu0 0
    %845 = vmatpush2.bf16.msra.mxu0 %v812
    %846 = vmatprep.subr.bf16.mxu0 0
    %847 = vmatpush2.bf16.msra.mxu0 %v811
    %848 = vmatprep.subr.bf16.mxu0 0
    %849 = vmatpush2.bf16.msra.mxu0 %v810
    %850 = vmatprep.mubr.bf16.mxu0 %v795
    %851 = vmatmul.mubr.bf16.gmra.mxu0 %v794
    %v852 = vpop.f32.mrf.mxu0
    %v853 = vadd.f32 0.0, %v852
    %v854 = vpop.f32.mrf.mxu0
    %v855 = vpop.f32.mrf.mxu0
    %v856 = vadd.f32 0.0, %v855
    %v857 = vpop.f32.mrf.mxu0
    %858 = vmatprep.mubr.bf16.mxu0 %v797
    %859 = vmatmul.mubr.bf16.gmra.mxu0 %v796
    %v860 = vpop.f32.mrf.mxu0
    %v861 = vadd.f32 0.0, %v860
    %v862 = vpop.f32.mrf.mxu0
    %v863 = vpop.f32.mrf.mxu0
    %v864 = vadd.f32 0.0, %v863
    %v865 = vpop.f32.mrf.mxu0
    %866 = vmatprep.mubr.bf16.mxu0 %v799
    %867 = vmatmul.mubr.bf16.gmra.mxu0 %v798
    %v868 = vpop.f32.mrf.mxu0
    %v869 = vadd.f32 0.0, %v868
    %v870 = vpop.f32.mrf.mxu0
    %v871 = vpop.f32.mrf.mxu0
    %v872 = vadd.f32 0.0, %v871
    %v873 = vpop.f32.mrf.mxu0
    %874 = vmatprep.mubr.bf16.mxu0 %v801
    %875 = vmatmul.mubr.bf16.gmra.mxu0 %v800
    %v876 = vpop.f32.mrf.mxu0
    %v877 = vadd.f32 0.0, %v876
    %v878 = vpop.f32.mrf.mxu0
    %v879 = vpop.f32.mrf.mxu0
    %v880 = vadd.f32 0.0, %v879
    %v881 = vpop.f32.mrf.mxu0
    %882 = vdwg.mxu0
    %v883 = vld [vmem:[#allocation2 + $0x80] sm:$0xf]
    %v884 = vld [vmem:[#allocation2 + $0x84] sm:$0xf]
    %v885 = vld [vmem:[#allocation2 + $0x88] sm:$0xf]
    %v886 = vld [vmem:[#allocation2 + $0x8c] sm:$0xf]
    %v887 = vld [vmem:[#allocation2 + $0x90] sm:$0xf]
    %v888 = vld [vmem:[#allocation2 + $0x94] sm:$0xf]
    %v889 = vld [vmem:[#allocation2 + $0x98] sm:$0xf]
    %v890 = vld [vmem:[#allocation2 + $0x9c] sm:$0xf]
    %v891 = vld [vmem:[#allocation2 + $0xa0] sm:$0xf]
    %v892 = vld [vmem:[#allocation2 + $0xa4] sm:$0xf]
    %v893 = vld [vmem:[#allocation2 + $0xa8] sm:$0xf]
    %v894 = vld [vmem:[#allocation2 + $0xac] sm:$0xf]
    %v895 = vld [vmem:[#allocation2 + $0xb0] sm:$0xf]
    %v896 = vld [vmem:[#allocation2 + $0xb4] sm:$0xf]
    %v897 = vld [vmem:[#allocation2 + $0xb8] sm:$0xf]
    %v898 = vld [vmem:[#allocation2 + $0xbc] sm:$0xf]
    %v899 = vpack.c.bf16 %v856, %v853
    %v900 = vpack.c.bf16 %v864, %v861
    %v901 = vpack.c.bf16 %v872, %v869
    %v902 = vpack.c.bf16 %v880, %v877
    %v903 = vlaneseq
    %v904 = vshrl.u32 %v903, 7
    %v905 = vsub.s32 2, %v904
    %v906 = vrot.slane %v59, %v905
    %v923 = vunpack.c.l.b16 %v883
    %v924 = vunpack.c.l.b16 %v884
    %v925 = vunpack.c.l.b16 %v885
    %v926 = vunpack.c.l.b16 %v886
    %v927 = vunpack.c.l.b16 %v887
    %v928 = vunpack.c.l.b16 %v888
    %v929 = vunpack.c.l.b16 %v889
    %v930 = vunpack.c.l.b16 %v890
    %v931 = vunpack.c.l.b16 %v891
    %v932 = vunpack.c.l.b16 %v892
    %v933 = vunpack.c.l.b16 %v893
    %v934 = vunpack.c.l.b16 %v894
    %v935 = vunpack.c.l.b16 %v895
    %v936 = vunpack.c.l.b16 %v896
    %v937 = vunpack.c.l.b16 %v897
    %v938 = vunpack.c.l.b16 %v898
    %v939 = vpack.c.b16 %v924, %v923
    %v940 = vpack.c.b16 %v926, %v925
    %v941 = vpack.c.b16 %v928, %v927
    %v942 = vpack.c.b16 %v930, %v929
    %v943 = vpack.c.b16 %v932, %v931
    %v944 = vpack.c.b16 %v934, %v933
    %v945 = vpack.c.b16 %v936, %v935
    %v946 = vpack.c.b16 %v938, %v937
    %955 = vmatprep.subr.bf16.mxu0 0
    %956 = vmatpush1.bf16.msra.mxu0 %v946
    %957 = vmatprep.subr.bf16.mxu0 0
    %958 = vmatpush1.bf16.msra.mxu0 %v945
    %959 = vmatprep.subr.bf16.mxu0 0
    %960 = vmatpush1.bf16.msra.mxu0 %v944
    %961 = vmatprep.subr.bf16.mxu0 0
    %962 = vmatpush1.bf16.msra.mxu0 %v943
    %963 = vmatprep.subr.bf16.mxu0 0
    %964 = vmatpush1.bf16.msra.mxu0 %v942
    %965 = vmatprep.subr.bf16.mxu0 0
    %966 = vmatpush1.bf16.msra.mxu0 %v941
    %967 = vmatprep.subr.bf16.mxu0 0
    %968 = vmatpush1.bf16.msra.mxu0 %v940
    %969 = vmatprep.subr.bf16.mxu0 0
    %970 = vmatpush1.bf16.msra.mxu0 %v939
    %971 = vmatprep.subr.bf16.mxu0 0
    %972 = vmatpush2.bf16.msra.mxu0 0
    %973 = vmatprep.subr.bf16.mxu0 0
    %974 = vmatpush2.bf16.msra.mxu0 0
    %975 = vmatprep.subr.bf16.mxu0 0
    %976 = vmatpush2.bf16.msra.mxu0 0
    %977 = vmatprep.subr.bf16.mxu0 0
    %978 = vmatpush2.bf16.msra.mxu0 0
    %979 = vmatprep.subr.bf16.mxu0 0
    %980 = vmatpush2.bf16.msra.mxu0 0
    %981 = vmatprep.subr.bf16.mxu0 0
    %982 = vmatpush2.bf16.msra.mxu0 0
    %983 = vmatprep.subr.bf16.mxu0 0
    %984 = vmatpush2.bf16.msra.mxu0 0
    %985 = vmatprep.subr.bf16.mxu0 0
    %986 = vmatpush2.bf16.msra.mxu0 0
    %987 = vmatprep.mubr.bf16.mxu0 0
    %988 = vmatmul.mubr.bf16.gmra.mxu0 %v899
    %v989 = vpop.f32.mrf.mxu0
    %v990 = vadd.f32 %v906, %v989
    %v991 = vpop.f32.mrf.mxu0
    %v992 = vpop.f32.mrf.mxu0
    %v993 = vadd.f32 %v906, %v992
    %v994 = vpop.f32.mrf.mxu0
    %995 = vmatprep.mubr.bf16.mxu0 0
    %996 = vmatmul.mubr.bf16.gmra.mxu0 %v900
    %v997 = vpop.f32.mrf.mxu0
    %v998 = vadd.f32 %v906, %v997
    %v999 = vpop.f32.mrf.mxu0
    %v1000 = vpop.f32.mrf.mxu0
    %v1001 = vadd.f32 %v906, %v1000
    %v1002 = vpop.f32.mrf.mxu0
    %1003 = vmatprep.mubr.bf16.mxu0 0
    %1004 = vmatmul.mubr.bf16.gmra.mxu0 %v901
    %v1005 = vpop.f32.mrf.mxu0
    %v1006 = vadd.f32 %v906, %v1005
    %v1007 = vpop.f32.mrf.mxu0
    %v1008 = vpop.f32.mrf.mxu0
    %v1009 = vadd.f32 %v906, %v1008
    %v1010 = vpop.f32.mrf.mxu0
    %1011 = vmatprep.mubr.bf16.mxu0 0
    %1012 = vmatmul.mubr.bf16.gmra.mxu0 %v902
    %v1013 = vpop.f32.mrf.mxu0
    %v1014 = vadd.f32 %v906, %v1013
    %v1015 = vpop.f32.mrf.mxu0
    %v1016 = vpop.f32.mrf.mxu0
    %v1017 = vadd.f32 %v906, %v1016
    %v1018 = vpop.f32.mrf.mxu0
    %1019 = vdwg.mxu0
    %v1020 = vmax.f32 %v990, 0.0
    %v1021 = vmax.f32 %v993, 0.0
    %v1022 = vmax.f32 %v998, 0.0
    %v1023 = vmax.f32 %v1001, 0.0
    %v1024 = vmax.f32 %v1006, 0.0
    %v1025 = vmax.f32 %v1009, 0.0
    %v1026 = vmax.f32 %v1014, 0.0
    %v1027 = vmax.f32 %v1017, 0.0
    %v1028 = vld [vmem:[#allocation2 + $0xc0] sm:$0xf]
    %v1029 = vld [vmem:[#allocation2 + $0xc4] sm:$0xf]
    %v1030 = vld [vmem:[#allocation2 + $0xc8] sm:$0xf]
    %v1031 = vld [vmem:[#allocation2 + $0xcc] sm:$0xf]
    %v1032 = vld [vmem:[#allocation2 + $0xd0] sm:$0xf]
    %v1033 = vld [vmem:[#allocation2 + $0xd4] sm:$0xf]
    %v1034 = vld [vmem:[#allocation2 + $0xd8] sm:$0xf]
    %v1035 = vld [vmem:[#allocation2 + $0xdc] sm:$0xf]
    %v1036 = vld [vmem:[#allocation2 + $0xe0] sm:$0xf]
    %v1037 = vld [vmem:[#allocation2 + $0xe4] sm:$0xf]
    %v1038 = vld [vmem:[#allocation2 + $0xe8] sm:$0xf]
    %v1039 = vld [vmem:[#allocation2 + $0xec] sm:$0xf]
    %v1040 = vld [vmem:[#allocation2 + $0xf0] sm:$0xf]
    %v1041 = vld [vmem:[#allocation2 + $0xf4] sm:$0xf]
    %v1042 = vld [vmem:[#allocation2 + $0xf8] sm:$0xf]
    %v1043 = vld [vmem:[#allocation2 + $0xfc] sm:$0xf]
    %v1044 = vpack.c.bf16 %v1021, %v1020
    %v1045 = vpack.c.bf16 %v1023, %v1022
    %v1046 = vpack.c.bf16 %v1025, %v1024
    %v1047 = vpack.c.bf16 %v1027, %v1026
    %v1048 = vlaneseq
    %v1049 = vshrl.u32 %v1048, 7
    %v1050 = vsub.s32 3, %v1049
    %v1051 = vrot.slane %v59, %v1050
    %v1068 = vunpack.c.l.b16 %v1028
    %v1069 = vunpack.c.l.b16 %v1029
    %v1070 = vunpack.c.l.b16 %v1030
    %v1071 = vunpack.c.l.b16 %v1031
    %v1072 = vunpack.c.l.b16 %v1032
    %v1073 = vunpack.c.l.b16 %v1033
    %v1074 = vunpack.c.l.b16 %v1034
    %v1075 = vunpack.c.l.b16 %v1035
    %v1076 = vunpack.c.l.b16 %v1036
    %v1077 = vunpack.c.l.b16 %v1037
    %v1078 = vunpack.c.l.b16 %v1038
    %v1079 = vunpack.c.l.b16 %v1039
    %v1080 = vunpack.c.l.b16 %v1040
    %v1081 = vunpack.c.l.b16 %v1041
    %v1082 = vunpack.c.l.b16 %v1042
    %v1083 = vunpack.c.l.b16 %v1043
    %v1084 = vpack.c.b16 %v1069, %v1068
    %v1085 = vpack.c.b16 %v1071, %v1070
    %v1086 = vpack.c.b16 %v1073, %v1072
    %v1087 = vpack.c.b16 %v1075, %v1074
    %v1088 = vpack.c.b16 %v1077, %v1076
    %v1089 = vpack.c.b16 %v1079, %v1078
    %v1090 = vpack.c.b16 %v1081, %v1080
    %v1091 = vpack.c.b16 %v1083, %v1082
    %1100 = vmatprep.subr.bf16.mxu0 0
    %1101 = vmatpush1.bf16.msra.mxu0 %v1091
    %1102 = vmatprep.subr.bf16.mxu0 0
    %1103 = vmatpush1.bf16.msra.mxu0 %v1090
    %1104 = vmatprep.subr.bf16.mxu0 0
    %1105 = vmatpush1.bf16.msra.mxu0 %v1089
    %1106 = vmatprep.subr.bf16.mxu0 0
    %1107 = vmatpush1.bf16.msra.mxu0 %v1088
    %1108 = vmatprep.subr.bf16.mxu0 0
    %1109 = vmatpush1.bf16.msra.mxu0 %v1087
    %1110 = vmatprep.subr.bf16.mxu0 0
    %1111 = vmatpush1.bf16.msra.mxu0 %v1086
    %1112 = vmatprep.subr.bf16.mxu0 0
    %1113 = vmatpush1.bf16.msra.mxu0 %v1085
    %1114 = vmatprep.subr.bf16.mxu0 0
    %1115 = vmatpush1.bf16.msra.mxu0 %v1084
    %1116 = vmatprep.subr.bf16.mxu0 0
    %1117 = vmatpush2.bf16.msra.mxu0 0
    %1118 = vmatprep.subr.bf16.mxu0 0
    %1119 = vmatpush2.bf16.msra.mxu0 0
    %1120 = vmatprep.subr.bf16.mxu0 0
    %1121 = vmatpush2.bf16.msra.mxu0 0
    %1122 = vmatprep.subr.bf16.mxu0 0
    %1123 = vmatpush2.bf16.msra.mxu0 0
    %1124 = vmatprep.subr.bf16.mxu0 0
    %1125 = vmatpush2.bf16.msra.mxu0 0
    %1126 = vmatprep.subr.bf16.mxu0 0
    %1127 = vmatpush2.bf16.msra.mxu0 0
    %1128 = vmatprep.subr.bf16.mxu0 0
    %1129 = vmatpush2.bf16.msra.mxu0 0
    %1130 = vmatprep.subr.bf16.mxu0 0
    %1131 = vmatpush2.bf16.msra.mxu0 0
    %1132 = vmatprep.mubr.bf16.mxu0 0
    %1133 = vmatmul.mubr.bf16.gmra.mxu0 %v1044
    %v1134 = vpop.f32.mrf.mxu0
    %v1135 = vadd.f32 %v1051, %v1134
    %v1136 = vpop.f32.mrf.mxu0
    %v1137 = vpop.f32.mrf.mxu0
    %v1138 = vadd.f32 %v1051, %v1137
    %v1139 = vpop.f32.mrf.mxu0
    %1140 = vmatprep.mubr.bf16.mxu0 0
    %1141 = vmatmul.mubr.bf16.gmra.mxu0 %v1045
    %v1142 = vpop.f32.mrf.mxu0
    %v1143 = vadd.f32 %v1051, %v1142
    %v1144 = vpop.f32.mrf.mxu0
    %v1145 = vpop.f32.mrf.mxu0
    %v1146 = vadd.f32 %v1051, %v1145
    %v1147 = vpop.f32.mrf.mxu0
    %1148 = vmatprep.mubr.bf16.mxu0 0
    %1149 = vmatmul.mubr.bf16.gmra.mxu0 %v1046
    %v1150 = vpop.f32.mrf.mxu0
    %v1151 = vadd.f32 %v1051, %v1150
    %v1152 = vpop.f32.mrf.mxu0
    %v1153 = vpop.f32.mrf.mxu0
    %v1154 = vadd.f32 %v1051, %v1153
    %v1155 = vpop.f32.mrf.mxu0
    %1156 = vmatprep.mubr.bf16.mxu0 0
    %1157 = vmatmul.mubr.bf16.gmra.mxu0 %v1047
    %v1158 = vpop.f32.mrf.mxu0
    %v1159 = vadd.f32 %v1051, %v1158
    %v1160 = vpop.f32.mrf.mxu0
    %v1161 = vpop.f32.mrf.mxu0
    %v1162 = vadd.f32 %v1051, %v1161
    %v1163 = vpop.f32.mrf.mxu0
    %1164 = vdwg.mxu0
    %vm1165 = vcmp.lt.s32.totalorder %v704, 8
    %v1166 = vmax.f32 %v1135, 0.0
    %v1167 = vmax.f32 %v1138, 0.0
    %v1168 = vmax.f32 %v1143, 0.0
    %v1169 = vmax.f32 %v1146, 0.0
    %v1170 = vmax.f32 %v1151, 0.0
    %v1171 = vmax.f32 %v1154, 0.0
    %v1172 = vmax.f32 %v1159, 0.0
    %v1173 = vmax.f32 %v1162, 0.0
    %v1174 = vsel %vm1165, %v1166, -1e+30
    %v1175 = vsel %vm1165, %v1167, -1e+30
    %v1176 = vsel %vm1165, %v1168, -1e+30
    %v1177 = vsel %vm1165, %v1169, -1e+30
    %v1178 = vsel %vm1165, %v1170, -1e+30
    %v1179 = vsel %vm1165, %v1171, -1e+30
    %v1180 = vsel %vm1165, %v1172, -1e+30
    %v1181 = vsel %vm1165, %v1173, -1e+30
    %1182 = vmax.xlane.f32.xlu0 %v1174
    %v1183 = vpop.xlane.xlu0 %1182
    %1184 = vmax.xlane.f32.xlu0 %v1175
    %v1185 = vpop.xlane.xlu0 %1184
    %1186 = vmax.xlane.f32.xlu0 %v1176
    %v1187 = vpop.xlane.xlu0 %1186
    %1188 = vmax.xlane.f32.xlu0 %v1177
    %v1189 = vpop.xlane.xlu0 %1188
    %1190 = vmax.xlane.f32.xlu0 %v1178
    %v1191 = vpop.xlane.xlu0 %1190
    %1192 = vmax.xlane.f32.xlu0 %v1179
    %v1193 = vpop.xlane.xlu0 %1192
    %1194 = vmax.xlane.f32.xlu0 %v1180
    %v1195 = vpop.xlane.xlu0 %1194
    %1196 = vmax.xlane.f32.xlu0 %v1181
    %v1197 = vpop.xlane.xlu0 %1196
    %v1198 = vsub.f32 %v1174, %v1183
    %v1199 = vsub.f32 %v1175, %v1185
    %v1200 = vsub.f32 %v1176, %v1187
    %v1201 = vsub.f32 %v1177, %v1189
    %v1202 = vsub.f32 %v1178, %v1191
    %v1203 = vsub.f32 %v1179, %v1193
    %v1204 = vsub.f32 %v1180, %v1195
    %v1205 = vsub.f32 %v1181, %v1197
    %v1206 = vmul.f32 %v1198, 1.442695
    %v1207 = vpow.pop %v1206
    %v1208 = vmul.f32 %v1199, 1.442695
    %v1209 = vpow.pop %v1208
    %v1210 = vmul.f32 %v1200, 1.442695
    %v1211 = vpow.pop %v1210
    %v1212 = vmul.f32 %v1201, 1.442695
    %v1213 = vpow.pop %v1212
    %v1214 = vmul.f32 %v1202, 1.442695
    %v1215 = vpow.pop %v1214
    %v1216 = vmul.f32 %v1203, 1.442695
    %v1217 = vpow.pop %v1216
    %v1218 = vmul.f32 %v1204, 1.442695
    %v1219 = vpow.pop %v1218
    %v1220 = vmul.f32 %v1205, 1.442695
    %v1221 = vpow.pop %v1220
    %v1222 = vsel %vm1165, %v1207, 0.0
    %v1223 = vsel %vm1165, %v1209, 0.0
    %v1224 = vsel %vm1165, %v1211, 0.0
    %v1225 = vsel %vm1165, %v1213, 0.0
    %v1226 = vsel %vm1165, %v1215, 0.0
    %v1227 = vsel %vm1165, %v1217, 0.0
    %v1228 = vsel %vm1165, %v1219, 0.0
    %v1229 = vsel %vm1165, %v1221, 0.0
    %1230 = vadd.xlane.f32.xlu0 %v1222
    %v1231 = vpop.xlane.xlu0 %1230
    %1232 = vadd.xlane.f32.xlu0 %v1223
    %v1233 = vpop.xlane.xlu0 %1232
    %1234 = vadd.xlane.f32.xlu0 %v1224
    %v1235 = vpop.xlane.xlu0 %1234
    %1236 = vadd.xlane.f32.xlu0 %v1225
    %v1237 = vpop.xlane.xlu0 %1236
    %1238 = vadd.xlane.f32.xlu0 %v1226
    %v1239 = vpop.xlane.xlu0 %1238
    %1240 = vadd.xlane.f32.xlu0 %v1227
    %v1241 = vpop.xlane.xlu0 %1240
    %1242 = vadd.xlane.f32.xlu0 %v1228
    %v1243 = vpop.xlane.xlu0 %1242
    %1244 = vadd.xlane.f32.xlu0 %v1229
    %v1245 = vpop.xlane.xlu0 %1244
    %v1246 = vrcp.pop %v1231
    %v1247 = vmul.f32 %v1222, %v1246
    %v1248 = vrcp.pop %v1233
    %v1249 = vmul.f32 %v1223, %v1248
    %v1250 = vrcp.pop %v1235
    %v1251 = vmul.f32 %v1224, %v1250
    %v1252 = vrcp.pop %v1237
    %v1253 = vmul.f32 %v1225, %v1252
    %v1254 = vrcp.pop %v1239
    %v1255 = vmul.f32 %v1226, %v1254
    %v1256 = vrcp.pop %v1241
    %v1257 = vmul.f32 %v1227, %v1256
    %v1258 = vrcp.pop %v1243
    %v1259 = vmul.f32 %v1228, %v1258
    %v1260 = vrcp.pop %v1245
    %v1261 = vmul.f32 %v1229, %v1260
    %vm1262 = vcmp.eq.s32.totalorder %v704, 8
    %v1263 = vsel %vm1262, %v1135, 0.0
    %v1264 = vsel %vm1262, %v1138, 0.0
    %v1265 = vsel %vm1262, %v1143, 0.0
    %v1266 = vsel %vm1262, %v1146, 0.0
    %v1267 = vsel %vm1262, %v1151, 0.0
    %v1268 = vsel %vm1262, %v1154, 0.0
    %v1269 = vsel %vm1262, %v1159, 0.0
    %v1270 = vsel %vm1262, %v1162, 0.0
    %v1271 = vsel %vm1165, %v1247, %v1263
    %v1272 = vsel %vm1165, %v1249, %v1264
    %v1273 = vsel %vm1165, %v1251, %v1265
    %v1274 = vsel %vm1165, %v1253, %v1266
    %v1275 = vsel %vm1165, %v1255, %v1267
    %v1276 = vsel %vm1165, %v1257, %v1268
    %v1277 = vsel %vm1165, %v1259, %v1269
    %v1278 = vsel %vm1165, %v1261, %v1270
    %1279 = vst [vmem:[%s2] sm:$0xff] %v1271
    %1280 = vst [vmem:[%s2 + $0x8] sm:$0xff] %v1272
    %1281 = vst [vmem:[%s2 + $0x10] sm:$0xff] %v1273
    %1282 = vst [vmem:[%s2 + $0x18] sm:$0xff] %v1274
    %1283 = vst [vmem:[%s2 + $0x20] sm:$0xff] %v1275
    %1284 = vst [vmem:[%s2 + $0x28] sm:$0xff] %v1276
    %1285 = vst [vmem:[%s2 + $0x30] sm:$0xff] %v1277
    %1286 = vst [vmem:[%s2 + $0x38] sm:$0xff] %v1278
    // Predicated region
    $region14: #{ppo_forward_batch.1} parent=1 // pred_check
      _
    $region15: #{ppo_forward_batch.1} parent=1 // pred_check_branch
      %1288 = sbr.rel (0) target = $region17
    $region16: #{ppo_forward_batch.1} parent=1 // pred_region
      _
    $region17: #{ppo_forward_batch.1} parent=1 // pred_fallthru
      _
    // Predicated region
    $region18: #{ppo_forward_batch.1} parent=1 // pred_check
      _
    $region19: #{ppo_forward_batch.1} parent=1 // pred_check_branch
      %1290 = sbr.rel (0) target = $region21
    $region20: #{ppo_forward_batch.1} parent=1 // pred_region
      _
    $region21: #{ppo_forward_batch.1} parent=1 // pred_fallthru
      _
    %1291 = vsyncpa [#allocation3], 1

</llo_original>
